<compile_context>
chip_gen: v6e
topology: v6e:2x2x1
jax: 0.10.0
libtpu: 0.0.40
codegen_flags: <defaults>
</compile_context>

<pallas_src>
import jax
import jax.numpy as jnp
from jax import lax
from jax.experimental import pallas as pl
from jax.experimental.pallas import tpu as pltpu

EPS = 1e-5
NEG_SLOPE = 0.01  # nn.LeakyReLU default negative_slope
LANE = 128


def _round_up(n, m):
    return ((n + m - 1) // m) * m


def _bn_train(h, gamma, beta):
    """BatchNorm1d, training-mode stats (biased variance), fused affine."""
    mean = jnp.mean(h, axis=0, keepdims=True)
    var = jnp.mean((h - mean) ** 2, axis=0, keepdims=True)
    scale = gamma * lax.rsqrt(var + EPS)          # (1, D): fused gamma*rsqrt
    return (h - mean) * scale + beta


def _leaky_relu(h):
    return jnp.where(h > 0, h, NEG_SLOPE * h)


def encdec_kernel(x_ref,
                  w1_ref, g1_ref, b1_ref,
                  w2_ref, g2_ref, b2_ref,
                  w3_ref, g3_ref, b3_ref,
                  w4_ref, bias4_ref,
                  o_ref):
    x = x_ref[...]

    # ---------------- Encoder ----------------
    # Linear(in_dim -> D1, bias=False) + BN + LeakyReLU
    h = jnp.dot(x, w1_ref[...], preferred_element_type=jnp.float32)
    h = _leaky_relu(_bn_train(h, g1_ref[...], b1_ref[...]))
    # Linear(D1 -> D2, bias=False) + BN + latent activation (tanh)
    h = jnp.dot(h, w2_ref[...], preferred_element_type=jnp.float32)
    h = jnp.tanh(_bn_train(h, g2_ref[...], b2_ref[...]))

    # ---------------- Decoder ----------------
    # Linear(D2 -> D1, bias=False) + BN + LeakyReLU
    h = jnp.dot(h, w3_ref[...], preferred_element_type=jnp.float32)
    h = _leaky_relu(_bn_train(h, g3_ref[...], b3_ref[...]))
    # Prediction head: Linear(D1 -> out_dim, bias=True) + Sigmoid (stable)
    h = jnp.dot(h, w4_ref[...], preferred_element_type=jnp.float32) + bias4_ref[...]
    e = jnp.exp(-jnp.abs(h))                       # EUP exp, never overflows
    s = 1.0 / (1.0 + e)
    o_ref[...] = jnp.where(h >= 0.0, s, 1.0 - s).astype(o_ref.dtype)


def base_encoder_decoder(x_nchw, padded_params, out_dim):
    """Full encoder/decoder forward pass in one gridless Pallas kernel.

    `padded_params` must already be lane-padded (see pad_params_lane_dense).
    Returns (B, out_dim) — padded output columns are sliced off here.
    """
    B = x_nchw.shape[0]
    x_flat = x_nchw.reshape(B, -1).astype(jnp.float32)
    in_dim = x_flat.shape[1]
    in_pad = _round_up(in_dim, LANE)
    if in_pad != in_dim:
        x_flat = jnp.pad(x_flat, ((0, 0), (0, in_pad - in_dim)))

    p = padded_params
    operands = (x_flat,
                p["w1"], p["g1"], p["b1"],
                p["w2"], p["g2"], p["b2"],
                p["w3"], p["g3"], p["b3"],
                p["w4"], p["bias4"])

    out_pad = p["w4"].shape[1]
    vmem_spec = pl.BlockSpec(memory_space=pltpu.MemorySpace.VMEM)

    out_padded = pl.pallas_call(
        encdec_kernel,
        out_shape=jax.ShapeDtypeStruct((B, out_pad), jnp.float32),
        in_specs=[vmem_spec] * len(operands),
        out_specs=vmem_spec,
    )(*operands)

    return out_padded[:, :out_dim]


def init_params(key, in_dim, layers, out_dim):
    """Deterministic parameter init matching the module's shapes.

    Linear weights are stored transposed: (in_features, out_features).
    BatchNorm gamma/beta are stored as (1, features) rows.
    """
    enc_dims = [in_dim] + layers            # e.g. [64, 32, 16]
    dec_dims = layers[::-1]                 # e.g. [16, 32]
    keys = jax.random.split(key, 16)
    k = iter(keys)

    def lin(kk, d_in, d_out):
        return (jax.random.normal(kk, (d_in, d_out), jnp.float32)
                / jnp.sqrt(jnp.float32(d_in)))

    def bn(kk, d):
        kg, kb = jax.random.split(kk)
        gamma = 1.0 + 0.1 * jax.random.normal(kg, (1, d), jnp.float32)
        beta = 0.1 * jax.random.normal(kb, (1, d), jnp.float32)
        return gamma, beta

    p = {}
    # Encoder: in_dim -> layers[0] -> layers[1]
    p["w1"] = lin(next(k), enc_dims[0], enc_dims[1])
    p["g1"], p["b1"] = bn(next(k), enc_dims[1])
    p["w2"] = lin(next(k), enc_dims[1], enc_dims[2])
    p["g2"], p["b2"] = bn(next(k), enc_dims[2])
    # Decoder: layers[-1] -> layers[-2] -> out_dim (+ bias)
    p["w3"] = lin(next(k), dec_dims[0], dec_dims[1])
    p["g3"], p["b3"] = bn(next(k), dec_dims[1])
    p["w4"] = lin(next(k), dec_dims[1], out_dim)
    p["bias4"] = 0.1 * jax.random.normal(next(k), (1, out_dim), jnp.float32)
    return p


def pad_params_lane_dense(params, in_dim, layers, out_dim):
    """Zero-pad all feature dims to multiples of 128 lanes (done once)."""
    d1, d2 = layers
    in_p = _round_up(in_dim, LANE)
    d1_p = _round_up(d1, LANE)
    d2_p = _round_up(d2, LANE)
    out_p = _round_up(out_dim, LANE)

    def pad2(a, rows, cols):
        return jnp.pad(a, ((0, rows - a.shape[0]), (0, cols - a.shape[1])))

    return {
        "w1": pad2(params["w1"], in_p, d1_p),
        "g1": pad2(params["g1"], 1, d1_p),
        "b1": pad2(params["b1"], 1, d1_p),
        "w2": pad2(params["w2"], d1_p, d2_p),
        "g2": pad2(params["g2"], 1, d2_p),
        "b2": pad2(params["b2"], 1, d2_p),
        "w3": pad2(params["w3"], d2_p, d1_p),
        "g3": pad2(params["g3"], 1, d1_p),
        "b3": pad2(params["b3"], 1, d1_p),
        "w4": pad2(params["w4"], d1_p, out_p),
        "bias4": pad2(params["bias4"], 1, out_p),
    }


def reference_forward(x_nchw, params):
    """Pure-JAX reference of the same forward pass (unpadded params)."""
    B = x_nchw.shape[0]
    h = x_nchw.reshape(B, -1).astype(jnp.float32)
    h = _leaky_relu(_bn_train(h @ params["w1"], params["g1"], params["b1"]))
    h = jnp.tanh(_bn_train(h @ params["w2"], params["g2"], params["b2"]))
    h = _leaky_relu(_bn_train(h @ params["w3"], params["g3"], params["b3"]))
    h = h @ params["w4"] + params["bias4"]
    return jax.nn.sigmoid(h)


if __name__ == "__main__":
    key = jax.random.PRNGKey(0)
    kx, kp = jax.random.split(key)

    # Module config: in_dim = C*H*W = 64, layers = [32, 16], out_dim = 64.
    B, C, H, W = 8, 4, 4, 4
    in_dim = C * H * W
    layers = [32, 16]
    out_dim = in_dim

    x = jax.random.normal(kx, (B, C, H, W), jnp.float32)
    params = init_params(kp, in_dim, layers, out_dim)
    padded_params = pad_params_lane_dense(params, in_dim, layers, out_dim)

    out = base_encoder_decoder(x, padded_params, out_dim)
    out = jax.block_until_ready(out)

    ref = reference_forward(x, params)
    assert out.shape == (B, out_dim)
    assert jnp.allclose(out, ref, atol=1e-5, rtol=1e-5), "mismatch vs reference"

    print("KERNEL_OK")
</pallas_src>

<mosaic_0001>
module attributes {stable_mosaic.version = 11 : i64} {
  func.func @encdec_kernel(%arg0: memref<8x128xf32, #tpu.memory_space<vmem>>, %arg1: memref<128x128xf32, #tpu.memory_space<vmem>>, %arg2: memref<1x128xf32, #tpu.memory_space<vmem>>, %arg3: memref<1x128xf32, #tpu.memory_space<vmem>>, %arg4: memref<128x128xf32, #tpu.memory_space<vmem>>, %arg5: memref<1x128xf32, #tpu.memory_space<vmem>>, %arg6: memref<1x128xf32, #tpu.memory_space<vmem>>, %arg7: memref<128x128xf32, #tpu.memory_space<vmem>>, %arg8: memref<1x128xf32, #tpu.memory_space<vmem>>, %arg9: memref<1x128xf32, #tpu.memory_space<vmem>>, %arg10: memref<128x128xf32, #tpu.memory_space<vmem>>, %arg11: memref<1x128xf32, #tpu.memory_space<vmem>>, %arg12: memref<8x128xf32, #tpu.memory_space<vmem>>) attributes {dimension_semantics = [], scalar_prefetch = 0 : i64, scratch_operands = 0 : i64, tpu.core_type = #tpu.core_type<tc>} {
    %c0 = arith.constant 0 : index
    %c0_0 = arith.constant 0 : index
    %0 = vector.load %arg0[%c0, %c0_0] : memref<8x128xf32, #tpu.memory_space<vmem>>, vector<8x128xf32>
    %c0_1 = arith.constant 0 : index
    %c0_2 = arith.constant 0 : index
    %1 = vector.load %arg1[%c0_1, %c0_2] : memref<128x128xf32, #tpu.memory_space<vmem>>, vector<128x128xf32>
    %cst = arith.constant dense<0.000000e+00> : vector<8x128xf32>
    %2 = tpu.matmul %0, %1, %cst {dimension_numbers = #tpu.dot_dimension_numbers<[1], [0], [0], [1], [0, 0, 1, 1], [], []>} : vector<8x128xf32>, vector<128x128xf32>, vector<8x128xf32> -> vector<8x128xf32>
    %c0_3 = arith.constant 0 : index
    %c0_4 = arith.constant 0 : index
    %3 = vector.load %arg2[%c0_3, %c0_4] : memref<1x128xf32, #tpu.memory_space<vmem>>, vector<1x128xf32>
    %c0_5 = arith.constant 0 : index
    %c0_6 = arith.constant 0 : index
    %4 = vector.load %arg3[%c0_5, %c0_6] : memref<1x128xf32, #tpu.memory_space<vmem>>, vector<1x128xf32>
    %cst_7 = arith.constant dense<0.000000e+00> : vector<128xf32>
    %5 = vector.multi_reduction <add>, %2, %cst_7 [0] : vector<8x128xf32> to vector<128xf32>
    %6 = vector.shape_cast %5 : vector<128xf32> to vector<1x128xf32>
    %cst_8 = arith.constant 8.000000e+00 : f32
    %7 = vector.broadcast %cst_8 : f32 to vector<1x128xf32>
    %8 = arith.divf %6, %7 : vector<1x128xf32>
    %9 = vector.broadcast %8 : vector<1x128xf32> to vector<8x128xf32>
    %10 = arith.subf %2, %9 : vector<8x128xf32>
    %11 = arith.mulf %10, %10 : vector<8x128xf32>
    %cst_9 = arith.constant dense<0.000000e+00> : vector<128xf32>
    %12 = vector.multi_reduction <add>, %11, %cst_9 [0] : vector<8x128xf32> to vector<128xf32>
    %13 = vector.shape_cast %12 : vector<128xf32> to vector<1x128xf32>
    %cst_10 = arith.constant 8.000000e+00 : f32
    %14 = vector.broadcast %cst_10 : f32 to vector<1x128xf32>
    %15 = arith.divf %13, %14 : vector<1x128xf32>
    %cst_11 = arith.constant 9.99999974E-6 : f32
    %16 = vector.broadcast %cst_11 : f32 to vector<1x128xf32>
    %17 = arith.addf %15, %16 : vector<1x128xf32>
    %18 = math.rsqrt %17 : vector<1x128xf32>
    %19 = arith.mulf %3, %18 : vector<1x128xf32>
    %20 = vector.broadcast %8 : vector<1x128xf32> to vector<8x128xf32>
    %21 = arith.subf %2, %20 : vector<8x128xf32>
    %22 = vector.broadcast %19 : vector<1x128xf32> to vector<8x128xf32>
    %23 = arith.mulf %21, %22 : vector<8x128xf32>
    %24 = vector.broadcast %4 : vector<1x128xf32> to vector<8x128xf32>
    %25 = arith.addf %23, %24 : vector<8x128xf32>
    %cst_12 = arith.constant 0.000000e+00 : f32
    %26 = vector.broadcast %cst_12 : f32 to vector<8x128xf32>
    %27 = arith.cmpf ogt, %25, %26 : vector<8x128xf32>
    %cst_13 = arith.constant 0.00999999977 : f32
    %28 = vector.broadcast %cst_13 : f32 to vector<8x128xf32>
    %29 = arith.mulf %28, %25 : vector<8x128xf32>
    %30 = arith.select %27, %25, %29 : vector<8x128xi1>, vector<8x128xf32>
    %c0_14 = arith.constant 0 : index
    %c0_15 = arith.constant 0 : index
    %31 = vector.load %arg4[%c0_14, %c0_15] : memref<128x128xf32, #tpu.memory_space<vmem>>, vector<128x128xf32>
    %cst_16 = arith.constant dense<0.000000e+00> : vector<8x128xf32>
    %32 = tpu.matmul %30, %31, %cst_16 {dimension_numbers = #tpu.dot_dimension_numbers<[1], [0], [0], [1], [0, 0, 1, 1], [], []>} : vector<8x128xf32>, vector<128x128xf32>, vector<8x128xf32> -> vector<8x128xf32>
    %c0_17 = arith.constant 0 : index
    %c0_18 = arith.constant 0 : index
    %33 = vector.load %arg5[%c0_17, %c0_18] : memref<1x128xf32, #tpu.memory_space<vmem>>, vector<1x128xf32>
    %c0_19 = arith.constant 0 : index
    %c0_20 = arith.constant 0 : index
    %34 = vector.load %arg6[%c0_19, %c0_20] : memref<1x128xf32, #tpu.memory_space<vmem>>, vector<1x128xf32>
    %cst_21 = arith.constant dense<0.000000e+00> : vector<128xf32>
    %35 = vector.multi_reduction <add>, %32, %cst_21 [0] : vector<8x128xf32> to vector<128xf32>
    %36 = vector.shape_cast %35 : vector<128xf32> to vector<1x128xf32>
    %cst_22 = arith.constant 8.000000e+00 : f32
    %37 = vector.broadcast %cst_22 : f32 to vector<1x128xf32>
    %38 = arith.divf %36, %37 : vector<1x128xf32>
    %39 = vector.broadcast %38 : vector<1x128xf32> to vector<8x128xf32>
    %40 = arith.subf %32, %39 : vector<8x128xf32>
    %41 = arith.mulf %40, %40 : vector<8x128xf32>
    %cst_23 = arith.constant dense<0.000000e+00> : vector<128xf32>
    %42 = vector.multi_reduction <add>, %41, %cst_23 [0] : vector<8x128xf32> to vector<128xf32>
    %43 = vector.shape_cast %42 : vector<128xf32> to vector<1x128xf32>
    %cst_24 = arith.constant 8.000000e+00 : f32
    %44 = vector.broadcast %cst_24 : f32 to vector<1x128xf32>
    %45 = arith.divf %43, %44 : vector<1x128xf32>
    %cst_25 = arith.constant 9.99999974E-6 : f32
    %46 = vector.broadcast %cst_25 : f32 to vector<1x128xf32>
    %47 = arith.addf %45, %46 : vector<1x128xf32>
    %48 = math.rsqrt %47 : vector<1x128xf32>
    %49 = arith.mulf %33, %48 : vector<1x128xf32>
    %50 = vector.broadcast %38 : vector<1x128xf32> to vector<8x128xf32>
    %51 = arith.subf %32, %50 : vector<8x128xf32>
    %52 = vector.broadcast %49 : vector<1x128xf32> to vector<8x128xf32>
    %53 = arith.mulf %51, %52 : vector<8x128xf32>
    %54 = vector.broadcast %34 : vector<1x128xf32> to vector<8x128xf32>
    %55 = arith.addf %53, %54 : vector<8x128xf32>
    %56 = math.tanh %55 : vector<8x128xf32>
    %c0_26 = arith.constant 0 : index
    %c0_27 = arith.constant 0 : index
    %57 = vector.load %arg7[%c0_26, %c0_27] : memref<128x128xf32, #tpu.memory_space<vmem>>, vector<128x128xf32>
    %cst_28 = arith.constant dense<0.000000e+00> : vector<8x128xf32>
    %58 = tpu.matmul %56, %57, %cst_28 {dimension_numbers = #tpu.dot_dimension_numbers<[1], [0], [0], [1], [0, 0, 1, 1], [], []>} : vector<8x128xf32>, vector<128x128xf32>, vector<8x128xf32> -> vector<8x128xf32>
    %c0_29 = arith.constant 0 : index
    %c0_30 = arith.constant 0 : index
    %59 = vector.load %arg8[%c0_29, %c0_30] : memref<1x128xf32, #tpu.memory_space<vmem>>, vector<1x128xf32>
    %c0_31 = arith.constant 0 : index
    %c0_32 = arith.constant 0 : index
    %60 = vector.load %arg9[%c0_31, %c0_32] : memref<1x128xf32, #tpu.memory_space<vmem>>, vector<1x128xf32>
    %cst_33 = arith.constant dense<0.000000e+00> : vector<128xf32>
    %61 = vector.multi_reduction <add>, %58, %cst_33 [0] : vector<8x128xf32> to vector<128xf32>
    %62 = vector.shape_cast %61 : vector<128xf32> to vector<1x128xf32>
    %cst_34 = arith.constant 8.000000e+00 : f32
    %63 = vector.broadcast %cst_34 : f32 to vector<1x128xf32>
    %64 = arith.divf %62, %63 : vector<1x128xf32>
    %65 = vector.broadcast %64 : vector<1x128xf32> to vector<8x128xf32>
    %66 = arith.subf %58, %65 : vector<8x128xf32>
    %67 = arith.mulf %66, %66 : vector<8x128xf32>
    %cst_35 = arith.constant dense<0.000000e+00> : vector<128xf32>
    %68 = vector.multi_reduction <add>, %67, %cst_35 [0] : vector<8x128xf32> to vector<128xf32>
    %69 = vector.shape_cast %68 : vector<128xf32> to vector<1x128xf32>
    %cst_36 = arith.constant 8.000000e+00 : f32
    %70 = vector.broadcast %cst_36 : f32 to vector<1x128xf32>
    %71 = arith.divf %69, %70 : vector<1x128xf32>
    %cst_37 = arith.constant 9.99999974E-6 : f32
    %72 = vector.broadcast %cst_37 : f32 to vector<1x128xf32>
    %73 = arith.addf %71, %72 : vector<1x128xf32>
    %74 = math.rsqrt %73 : vector<1x128xf32>
    %75 = arith.mulf %59, %74 : vector<1x128xf32>
    %76 = vector.broadcast %64 : vector<1x128xf32> to vector<8x128xf32>
    %77 = arith.subf %58, %76 : vector<8x128xf32>
    %78 = vector.broadcast %75 : vector<1x128xf32> to vector<8x128xf32>
    %79 = arith.mulf %77, %78 : vector<8x128xf32>
    %80 = vector.broadcast %60 : vector<1x128xf32> to vector<8x128xf32>
    %81 = arith.addf %79, %80 : vector<8x128xf32>
    %cst_38 = arith.constant 0.000000e+00 : f32
    %82 = vector.broadcast %cst_38 : f32 to vector<8x128xf32>
    %83 = arith.cmpf ogt, %81, %82 : vector<8x128xf32>
    %cst_39 = arith.constant 0.00999999977 : f32
    %84 = vector.broadcast %cst_39 : f32 to vector<8x128xf32>
    %85 = arith.mulf %84, %81 : vector<8x128xf32>
    %86 = arith.select %83, %81, %85 : vector<8x128xi1>, vector<8x128xf32>
    %c0_40 = arith.constant 0 : index
    %c0_41 = arith.constant 0 : index
    %87 = vector.load %arg10[%c0_40, %c0_41] : memref<128x128xf32, #tpu.memory_space<vmem>>, vector<128x128xf32>
    %cst_42 = arith.constant dense<0.000000e+00> : vector<8x128xf32>
    %88 = tpu.matmul %86, %87, %cst_42 {dimension_numbers = #tpu.dot_dimension_numbers<[1], [0], [0], [1], [0, 0, 1, 1], [], []>} : vector<8x128xf32>, vector<128x128xf32>, vector<8x128xf32> -> vector<8x128xf32>
    %c0_43 = arith.constant 0 : index
    %c0_44 = arith.constant 0 : index
    %89 = vector.load %arg11[%c0_43, %c0_44] : memref<1x128xf32, #tpu.memory_space<vmem>>, vector<1x128xf32>
    %90 = vector.broadcast %89 : vector<1x128xf32> to vector<8x128xf32>
    %91 = arith.addf %88, %90 : vector<8x128xf32>
    %92 = math.absf %91 : vector<8x128xf32>
    %cst_45 = arith.constant 0.000000e+00 : f32
    %93 = vector.broadcast %cst_45 : f32 to vector<8x128xf32>
    %94 = arith.subf %93, %92 : vector<8x128xf32>
    %95 = math.exp %94 : vector<8x128xf32>
    %cst_46 = arith.constant 1.000000e+00 : f32
    %96 = vector.broadcast %cst_46 : f32 to vector<8x128xf32>
    %97 = arith.addf %96, %95 : vector<8x128xf32>
    %cst_47 = arith.constant 1.000000e+00 : f32
    %98 = vector.broadcast %cst_47 : f32 to vector<8x128xf32>
    %99 = arith.divf %98, %97 : vector<8x128xf32>
    %cst_48 = arith.constant 0.000000e+00 : f32
    %100 = vector.broadcast %cst_48 : f32 to vector<8x128xf32>
    %101 = arith.cmpf oge, %91, %100 : vector<8x128xf32>
    %cst_49 = arith.constant 1.000000e+00 : f32
    %102 = vector.broadcast %cst_49 : f32 to vector<8x128xf32>
    %103 = arith.subf %102, %99 : vector<8x128xf32>
    %104 = arith.select %101, %99, %103 : vector<8x128xi1>, vector<8x128xf32>
    %c0_50 = arith.constant 0 : index
    %c0_51 = arith.constant 0 : index
    %105 = vector.load %arg12[%c0_50, %c0_51] : memref<8x128xf32, #tpu.memory_space<vmem>>, vector<8x128xf32>
    tpu.vector_store %arg12[%c0_50, %c0_51], %104 {strides = array<i32>} : memref<8x128xf32, #tpu.memory_space<vmem>>, vector<8x128xf32>,
    return
  }
}

</mosaic_0001>

<llo_original>
// kernel: tpu_custom_call.1
$region0: #{tpu_custom_call.1}
  #allocation0 [shape = 'u32[]', space=smem, size = 0x4, offset = 0x4, fixed_abs, tag = 'smem constant byte address 0x4 - core index']
  #allocation1 [shape = 'u32[144,128]{1,0:T(1,128)}', space=vmem, size = 0x12000, scoped, tag = 'internal scratch']
  %s0 = inlined_call_operand.hbm [shape: f32[8,128], index: 0, kind: input, shape index: {}]
  %s1 = inlined_call_operand.hbm [shape: f32[128,128], index: 1, kind: input, shape index: {}]
  %s2 = inlined_call_operand.vmem [shape: f32[1,128], index: 2, kind: input, shape index: {}]
  %s3 = inlined_call_operand.vmem [shape: f32[1,128], index: 3, kind: input, shape index: {}]
  %s4 = inlined_call_operand.hbm [shape: f32[128,128], index: 4, kind: input, shape index: {}]
  %s5 = inlined_call_operand.vmem [shape: f32[1,128], index: 5, kind: input, shape index: {}]
  %s6 = inlined_call_operand.vmem [shape: f32[1,128], index: 6, kind: input, shape index: {}]
  %s7 = inlined_call_operand.hbm [shape: f32[128,128], index: 7, kind: input, shape index: {}]
  %s8 = inlined_call_operand.vmem [shape: f32[1,128], index: 8, kind: input, shape index: {}]
  %s9 = inlined_call_operand.vmem [shape: f32[1,128], index: 9, kind: input, shape index: {}]
  %s10 = inlined_call_operand.hbm [shape: f32[128,128], index: 10, kind: input, shape index: {}]
  %s11 = inlined_call_operand.vmem [shape: f32[1,128], index: 11, kind: input, shape index: {}]
  %s12 = inlined_call_operand.hbm [shape: f32[8,128], index: 12, kind: output, shape index: {}]
  %s13 = sld [smem:[#allocation0]]
  $region78: #{tpu_custom_call.1} parent=0
    _
  %s15 = ssub.s32 1, %s13
  %s16 = scalar_select 0, %s15, %s13
  $region1: #{tpu_custom_call.1} parent=0
    #allocation2 [shape = 'u8[4096]{0}', space=vmem, size = 0x1000, scoped, tag = 'input window, operand 0, single buffered']
    #allocation3 [shape = 's32[1]{0}', space=sflag, size = 0x4, scoped, tag = 'scoped memory for tpu_custom_call.1']
    #allocation4 [shape = 's32[1]{0}', space=sflag, size = 0x4, scoped, tag = 'scoped memory for tpu_custom_call.1']
    #allocation5 [shape = 'u8[65536]{0}', space=vmem, size = 0x10000, scoped, tag = 'input window, operand 1, single buffered']
    #allocation6 [shape = 's32[1]{0}', space=sflag, size = 0x4, scoped, tag = 'scoped memory for tpu_custom_call.1']
    #allocation7 [shape = 'u8[65536]{0}', space=vmem, size = 0x10000, scoped, tag = 'input window, operand 4, single buffered']
    #allocation8 [shape = 'u8[65536]{0}', space=vmem, size = 0x10000, scoped, tag = 'input window, operand 7, single buffered']
    #allocation9 [shape = 's32[1]{0}', space=sflag, size = 0x4, scoped, tag = 'scoped memory for tpu_custom_call.1']
    #allocation10 [shape = 'u8[65536]{0}', space=vmem, size = 0x10000, scoped, tag = 'input window, operand 10, single buffered']
    #allocation11 [shape = 'u8[4096]{0}', space=vmem, size = 0x1000, scoped, tag = 'output window, operand 0, single buffered']
    %17 = vsyncpa [#allocation3], 0
    %18 = vsyncpa [#allocation6], 0
    %19 = vsyncpa [#allocation9], 0
    %20 = vsyncpa [#allocation4], 0
    // Predicated region
    $region2: #{tpu_custom_call.1} parent=1 // pred_check
      _
    $region3: #{tpu_custom_call.1} parent=1 // pred_check_branch
      %22 = sbr.rel (0) target = $region5
    $region4: #{tpu_custom_call.1} parent=1 // pred_region
      %s24 = ssub.s32 128, 128
      %25 = vsyncadd [#allocation3], %s24
      %s27 = sshll.u32 [#allocation2], 4
      %s28 = int_to_ptr.vmem [resolvable:$true] %s27
      %30 = dma.hbm_to_vmem [thread:$0]  %s0, 128, %s28, [#allocation3]
    $region5: #{tpu_custom_call.1} parent=1 // pred_fallthru
      _
    // Predicated region
    $region6: #{tpu_custom_call.1} parent=1 // pred_check
      _
    $region7: #{tpu_custom_call.1} parent=1 // pred_check_branch
      %32 = sbr.rel (0) target = $region9
    $region8: #{tpu_custom_call.1} parent=1 // pred_region
      %s34 = ssub.s32 2048, 2048
      %35 = vsyncadd [#allocation6], %s34
      %s36 = sshll.u32 [#allocation5], 4
      %s37 = int_to_ptr.vmem [resolvable:$true] %s36
      %42 = dma.hbm_to_vmem [thread:$0]  %s1, 2048, %s37, [#allocation6], 128, 128, 8
    $region9: #{tpu_custom_call.1} parent=1 // pred_fallthru
      _
    // Predicated region
    $region10: #{tpu_custom_call.1} parent=1 // pred_check
      _
    $region11: #{tpu_custom_call.1} parent=1 // pred_check_branch
      %44 = sbr.rel (0) target = $region13
    $region12: #{tpu_custom_call.1} parent=1 // pred_region
      _
    $region13: #{tpu_custom_call.1} parent=1 // pred_fallthru
      _
    // Predicated region
    $region14: #{tpu_custom_call.1} parent=1 // pred_check
      _
    $region15: #{tpu_custom_call.1} parent=1 // pred_check_branch
      %46 = sbr.rel (0) target = $region17
    $region16: #{tpu_custom_call.1} parent=1 // pred_region
      _
    $region17: #{tpu_custom_call.1} parent=1 // pred_fallthru
      _
    // Predicated region
    $region18: #{tpu_custom_call.1} parent=1 // pred_check
      _
    $region19: #{tpu_custom_call.1} parent=1 // pred_check_branch
      %48 = sbr.rel (0) target = $region21
    $region20: #{tpu_custom_call.1} parent=1 // pred_region
      %s50 = ssub.s32 2048, 2048
      %51 = vsyncadd [#allocation6], %s50
      %s52 = sshll.u32 [#allocation7], 4
      %s53 = int_to_ptr.vmem [resolvable:$true] %s52
      %58 = dma.hbm_to_vmem [thread:$0]  %s4, 2048, %s53, [#allocation6], 128, 128, 8
    $region21: #{tpu_custom_call.1} parent=1 // pred_fallthru
      _
    // Predicated region
    $region22: #{tpu_custom_call.1} parent=1 // pred_check
      _
    $region23: #{tpu_custom_call.1} parent=1 // pred_check_branch
      %60 = sbr.rel (0) target = $region25
    $region24: #{tpu_custom_call.1} parent=1 // pred_region
      _
    $region25: #{tpu_custom_call.1} parent=1 // pred_fallthru
      _
    // Predicated region
    $region26: #{tpu_custom_call.1} parent=1 // pred_check
      _
    $region27: #{tpu_custom_call.1} parent=1 // pred_check_branch
      %62 = sbr.rel (0) target = $region29
    $region28: #{tpu_custom_call.1} parent=1 // pred_region
      _
    $region29: #{tpu_custom_call.1} parent=1 // pred_fallthru
      _
    // Predicated region
    $region30: #{tpu_custom_call.1} parent=1 // pred_check
      _
    $region31: #{tpu_custom_call.1} parent=1 // pred_check_branch
      %64 = sbr.rel (0) target = $region33
    $region32: #{tpu_custom_call.1} parent=1 // pred_region
      %s66 = ssub.s32 2048, 2048
      %67 = vsyncadd [#allocation9], %s66
      %s68 = sshll.u32 [#allocation8], 4
      %s69 = int_to_ptr.vmem [resolvable:$true] %s68
      %74 = dma.hbm_to_vmem [thread:$0]  %s7, 2048, %s69, [#allocation9], 128, 128, 8
    $region33: #{tpu_custom_call.1} parent=1 // pred_fallthru
      _
    // Predicated region
    $region34: #{tpu_custom_call.1} parent=1 // pred_check
      _
    $region35: #{tpu_custom_call.1} parent=1 // pred_check_branch
      %76 = sbr.rel (0) target = $region37
    $region36: #{tpu_custom_call.1} parent=1 // pred_region
      _
    $region37: #{tpu_custom_call.1} parent=1 // pred_fallthru
      _
    // Predicated region
    $region38: #{tpu_custom_call.1} parent=1 // pred_check
      _
    $region39: #{tpu_custom_call.1} parent=1 // pred_check_branch
      %78 = sbr.rel (0) target = $region41
    $region40: #{tpu_custom_call.1} parent=1 // pred_region
      _
    $region41: #{tpu_custom_call.1} parent=1 // pred_fallthru
      _
    // Predicated region
    $region42: #{tpu_custom_call.1} parent=1 // pred_check
      _
    $region43: #{tpu_custom_call.1} parent=1 // pred_check_branch
      %80 = sbr.rel (0) target = $region45
    $region44: #{tpu_custom_call.1} parent=1 // pred_region
      %s82 = ssub.s32 2048, 2048
      %83 = vsyncadd [#allocation9], %s82
      %s84 = sshll.u32 [#allocation10], 4
      %s85 = int_to_ptr.vmem [resolvable:$true] %s84
      %90 = dma.hbm_to_vmem [thread:$0]  %s10, 2048, %s85, [#allocation9], 128, 128, 8
    $region45: #{tpu_custom_call.1} parent=1 // pred_fallthru
      _
    // Predicated region
    $region46: #{tpu_custom_call.1} parent=1 // pred_check
      _
    $region47: #{tpu_custom_call.1} parent=1 // pred_check_branch
      %92 = sbr.rel (0) target = $region49
    $region48: #{tpu_custom_call.1} parent=1 // pred_region
      _
    $region49: #{tpu_custom_call.1} parent=1 // pred_fallthru
      _
    // Predicated region
    $region50: #{tpu_custom_call.1} parent=1 // pred_check
      _
    $region51: #{tpu_custom_call.1} parent=1 // pred_check_branch
      %94 = sbr.rel (0) target = $region53
    $region52: #{tpu_custom_call.1} parent=1 // pred_region
      %95 = dma.done [#allocation3], 128
    $region53: #{tpu_custom_call.1} parent=1 // pred_fallthru
      _
    // Predicated region
    $region54: #{tpu_custom_call.1} parent=1 // pred_check
      _
    $region55: #{tpu_custom_call.1} parent=1 // pred_check_branch
      %97 = sbr.rel (0) target = $region57
    $region56: #{tpu_custom_call.1} parent=1 // pred_region
      %98 = dma.done [#allocation6], 2048
    $region57: #{tpu_custom_call.1} parent=1 // pred_fallthru
      _
    // Predicated region
    $region58: #{tpu_custom_call.1} parent=1 // pred_check
      _
    $region59: #{tpu_custom_call.1} parent=1 // pred_check_branch
      %100 = sbr.rel (0) target = $region61
    $region60: #{tpu_custom_call.1} parent=1 // pred_region
      %101 = dma.done [#allocation6], 2048
    $region61: #{tpu_custom_call.1} parent=1 // pred_fallthru
      _
    // Predicated region
    $region62: #{tpu_custom_call.1} parent=1 // pred_check
      _
    $region63: #{tpu_custom_call.1} parent=1 // pred_check_branch
      %103 = sbr.rel (0) target = $region65
    $region64: #{tpu_custom_call.1} parent=1 // pred_region
      %104 = dma.done [#allocation9], 2048
    $region65: #{tpu_custom_call.1} parent=1 // pred_fallthru
      _
    // Predicated region
    $region66: #{tpu_custom_call.1} parent=1 // pred_check
      _
    $region67: #{tpu_custom_call.1} parent=1 // pred_check_branch
      %106 = sbr.rel (0) target = $region69
    $region68: #{tpu_custom_call.1} parent=1 // pred_region
      %107 = dma.done [#allocation9], 2048
    $region69: #{tpu_custom_call.1} parent=1 // pred_fallthru
      _
    %v108 = vld [vmem:[#allocation2] sm:$0xff]
    %v109 = vld [vmem:[#allocation5] sm:$0xff]
    %v110 = vld [vmem:[#allocation5 + $0x8] sm:$0xff]
    %v111 = vld [vmem:[#allocation5 + $0x10] sm:$0xff]
    %v112 = vld [vmem:[#allocation5 + $0x18] sm:$0xff]
    %v113 = vld [vmem:[#allocation5 + $0x20] sm:$0xff]
    %v114 = vld [vmem:[#allocation5 + $0x28] sm:$0xff]
    %v115 = vld [vmem:[#allocation5 + $0x30] sm:$0xff]
    %v116 = vld [vmem:[#allocation5 + $0x38] sm:$0xff]
    %v117 = vld [vmem:[#allocation5 + $0x40] sm:$0xff]
    %v118 = vld [vmem:[#allocation5 + $0x48] sm:$0xff]
    %v119 = vld [vmem:[#allocation5 + $0x50] sm:$0xff]
    %v120 = vld [vmem:[#allocation5 + $0x58] sm:$0xff]
    %v121 = vld [vmem:[#allocation5 + $0x60] sm:$0xff]
    %v122 = vld [vmem:[#allocation5 + $0x68] sm:$0xff]
    %v123 = vld [vmem:[#allocation5 + $0x70] sm:$0xff]
    %v124 = vld [vmem:[#allocation5 + $0x78] sm:$0xff]
    %125 = vmatprep.subr.mxu0 0.0
    %126 = vmatpush1.msra.mxu0 %v124
    %127 = vmatprep.subr.mxu0 0.0
    %128 = vmatpush1.msra.mxu0 %v123
    %129 = vmatprep.subr.mxu0 0.0
    %130 = vmatpush1.msra.mxu0 %v122
    %131 = vmatprep.subr.mxu0 0.0
    %132 = vmatpush1.msra.mxu0 %v121
    %133 = vmatprep.subr.mxu0 0.0
    %134 = vmatpush1.msra.mxu0 %v120
    %135 = vmatprep.subr.mxu0 0.0
    %136 = vmatpush1.msra.mxu0 %v119
    %137 = vmatprep.subr.mxu0 0.0
    %138 = vmatpush1.msra.mxu0 %v118
    %139 = vmatprep.subr.mxu0 0.0
    %140 = vmatpush1.msra.mxu0 %v117
    %141 = vmatprep.subr.mxu0 0.0
    %142 = vmatpush1.msra.mxu0 %v116
    %143 = vmatprep.subr.mxu0 0.0
    %144 = vmatpush1.msra.mxu0 %v115
    %145 = vmatprep.subr.mxu0 0.0
    %146 = vmatpush1.msra.mxu0 %v114
    %147 = vmatprep.subr.mxu0 0.0
    %148 = vmatpush1.msra.mxu0 %v113
    %149 = vmatprep.subr.mxu0 0.0
    %150 = vmatpush1.msra.mxu0 %v112
    %151 = vmatprep.subr.mxu0 0.0
    %152 = vmatpush1.msra.mxu0 %v111
    %153 = vmatprep.subr.mxu0 0.0
    %154 = vmatpush1.msra.mxu0 %v110
    %155 = vmatprep.subr.mxu0 0.0
    %156 = vmatpush1.msra.mxu0 %v109
    %157 = vmatprep.subr.mxu0 0.0
    %158 = vmatpush2.msra.mxu0 0.0
    %159 = vmatprep.subr.mxu0 0.0
    %160 = vmatpush2.msra.mxu0 0.0
    %161 = vmatprep.subr.mxu0 0.0
    %162 = vmatpush2.msra.mxu0 0.0
    %163 = vmatprep.subr.mxu0 0.0
    %164 = vmatpush2.msra.mxu0 0.0
    %165 = vmatprep.subr.mxu0 0.0
    %166 = vmatpush2.msra.mxu0 0.0
    %167 = vmatprep.subr.mxu0 0.0
    %168 = vmatpush2.msra.mxu0 0.0
    %169 = vmatprep.subr.mxu0 0.0
    %170 = vmatpush2.msra.mxu0 0.0
    %171 = vmatprep.subr.mxu0 0.0
    %172 = vmatpush2.msra.mxu0 0.0
    %173 = vmatprep.subr.mxu0 0.0
    %174 = vmatpush2.msra.mxu0 0.0
    %175 = vmatprep.subr.mxu0 0.0
    %176 = vmatpush2.msra.mxu0 0.0
    %177 = vmatprep.subr.mxu0 0.0
    %178 = vmatpush2.msra.mxu0 0.0
    %179 = vmatprep.subr.mxu0 0.0
    %180 = vmatpush2.msra.mxu0 0.0
    %181 = vmatprep.subr.mxu0 0.0
    %182 = vmatpush2.msra.mxu0 0.0
    %183 = vmatprep.subr.mxu0 0.0
    %184 = vmatpush2.msra.mxu0 0.0
    %185 = vmatprep.subr.mxu0 0.0
    %186 = vmatpush2.msra.mxu0 0.0
    %187 = vmatprep.subr.mxu0 0.0
    %188 = vmatpush2.msra.mxu0 0.0
    %189 = vmatprep.mubr.f32.mxu0 0.0
    %190 = vmatmul.mubr.f32.gmra.mxu0 %v108
    %v191 = vpop.f32.mrf.mxu0
    %v192 = vadd.f32 0.0, %v191
    %v193 = vpop.f32.mrf.mxu0
    %194 = vdwg.mxu0
    %v195 = vld [vmem:[%s2] sm:$0x1]
    %v196 = vld [vmem:[%s3] sm:$0x1]
    %v197 = vrot.slane %v192, 4
    %v198 = vadd.f32 %v192, %v197
    %v199 = vrot.slane %v198, 2
    %v200 = vadd.f32 %v198, %v199
    %v201 = vrot.slane %v200, 1
    %v202 = vadd.f32 %v200, %v201
    %v203 = vrcp.pop 8.0
    %v204 = vmul.f32 %v202, %v203
    %v205 = vsub.f32 %v192, %v204
    %v206 = vmul.f32 %v205, %v205
    %v207 = vrot.slane %v206, 4
    %v208 = vadd.f32 %v206, %v207
    %v209 = vrot.slane %v208, 2
    %v210 = vadd.f32 %v208, %v209
    %v211 = vrot.slane %v210, 1
    %v212 = vadd.f32 %v210, %v211
    %v213 = vmul.f32 %v212, %v203
    %v214 = vadd.f32 %v213, 1e-05
    %v215 = vrsqrt.pop %v214
    %v216 = vmul.f32 %v195, %v215
    %v218 = vlaneseq
    %v219 = vshrl.u32 %v218, 7
    %v220 = vsub.s32 0, %v219
    %v221 = vrot.slane %v216, %v220
    %v223 = vmul.f32 %v205, %v221
    %v225 = vlaneseq
    %v226 = vshrl.u32 %v225, 7
    %v227 = vsub.s32 0, %v226
    %v228 = vrot.slane %v196, %v227
    %v230 = vadd.f32 %v223, %v228
    %vm231 = vcmp.gt.f32.partialorder %v230, 0.0
    %v232 = vmul.f32 %v230, 0.01
    %v233 = vsel %vm231, %v230, %v232
    %v234 = vld [vmem:[#allocation7] sm:$0xff]
    %v235 = vld [vmem:[#allocation7 + $0x8] sm:$0xff]
    %v236 = vld [vmem:[#allocation7 + $0x10] sm:$0xff]
    %v237 = vld [vmem:[#allocation7 + $0x18] sm:$0xff]
    %v238 = vld [vmem:[#allocation7 + $0x20] sm:$0xff]
    %v239 = vld [vmem:[#allocation7 + $0x28] sm:$0xff]
    %v240 = vld [vmem:[#allocation7 + $0x30] sm:$0xff]
    %v241 = vld [vmem:[#allocation7 + $0x38] sm:$0xff]
    %v242 = vld [vmem:[#allocation7 + $0x40] sm:$0xff]
    %v243 = vld [vmem:[#allocation7 + $0x48] sm:$0xff]
    %v244 = vld [vmem:[#allocation7 + $0x50] sm:$0xff]
    %v245 = vld [vmem:[#allocation7 + $0x58] sm:$0xff]
    %v246 = vld [vmem:[#allocation7 + $0x60] sm:$0xff]
    %v247 = vld [vmem:[#allocation7 + $0x68] sm:$0xff]
    %v248 = vld [vmem:[#allocation7 + $0x70] sm:$0xff]
    %v249 = vld [vmem:[#allocation7 + $0x78] sm:$0xff]
    %250 = vmatprep.subr.mxu0 0.0
    %251 = vmatpush1.msra.mxu0 %v249
    %252 = vmatprep.subr.mxu0 0.0
    %253 = vmatpush1.msra.mxu0 %v248
    %254 = vmatprep.subr.mxu0 0.0
    %255 = vmatpush1.msra.mxu0 %v247
    %256 = vmatprep.subr.mxu0 0.0
    %257 = vmatpush1.msra.mxu0 %v246
    %258 = vmatprep.subr.mxu0 0.0
    %259 = vmatpush1.msra.mxu0 %v245
    %260 = vmatprep.subr.mxu0 0.0
    %261 = vmatpush1.msra.mxu0 %v244
    %262 = vmatprep.subr.mxu0 0.0
    %263 = vmatpush1.msra.mxu0 %v243
    %264 = vmatprep.subr.mxu0 0.0
    %265 = vmatpush1.msra.mxu0 %v242
    %266 = vmatprep.subr.mxu0 0.0
    %267 = vmatpush1.msra.mxu0 %v241
    %268 = vmatprep.subr.mxu0 0.0
    %269 = vmatpush1.msra.mxu0 %v240
    %270 = vmatprep.subr.mxu0 0.0
    %271 = vmatpush1.msra.mxu0 %v239
    %272 = vmatprep.subr.mxu0 0.0
    %273 = vmatpush1.msra.mxu0 %v238
    %274 = vmatprep.subr.mxu0 0.0
    %275 = vmatpush1.msra.mxu0 %v237
    %276 = vmatprep.subr.mxu0 0.0
    %277 = vmatpush1.msra.mxu0 %v236
    %278 = vmatprep.subr.mxu0 0.0
    %279 = vmatpush1.msra.mxu0 %v235
    %280 = vmatprep.subr.mxu0 0.0
    %281 = vmatpush1.msra.mxu0 %v234
    %282 = vmatprep.subr.mxu0 0.0
    %283 = vmatpush2.msra.mxu0 0.0
    %284 = vmatprep.subr.mxu0 0.0
    %285 = vmatpush2.msra.mxu0 0.0
    %286 = vmatprep.subr.mxu0 0.0
    %287 = vmatpush2.msra.mxu0 0.0
    %288 = vmatprep.subr.mxu0 0.0
    %289 = vmatpush2.msra.mxu0 0.0
    %290 = vmatprep.subr.mxu0 0.0
    %291 = vmatpush2.msra.mxu0 0.0
    %292 = vmatprep.subr.mxu0 0.0
    %293 = vmatpush2.msra.mxu0 0.0
    %294 = vmatprep.subr.mxu0 0.0
    %295 = vmatpush2.msra.mxu0 0.0
    %296 = vmatprep.subr.mxu0 0.0
    %297 = vmatpush2.msra.mxu0 0.0
    %298 = vmatprep.subr.mxu0 0.0
    %299 = vmatpush2.msra.mxu0 0.0
    %300 = vmatprep.subr.mxu0 0.0
    %301 = vmatpush2.msra.mxu0 0.0
    %302 = vmatprep.subr.mxu0 0.0
    %303 = vmatpush2.msra.mxu0 0.0
    %304 = vmatprep.subr.mxu0 0.0
    %305 = vmatpush2.msra.mxu0 0.0
    %306 = vmatprep.subr.mxu0 0.0
    %307 = vmatpush2.msra.mxu0 0.0
    %308 = vmatprep.subr.mxu0 0.0
    %309 = vmatpush2.msra.mxu0 0.0
    %310 = vmatprep.subr.mxu0 0.0
    %311 = vmatpush2.msra.mxu0 0.0
    %312 = vmatprep.subr.mxu0 0.0
    %313 = vmatpush2.msra.mxu0 0.0
    %314 = vmatprep.mubr.f32.mxu0 0.0
    %315 = vmatmul.mubr.f32.gmra.mxu0 %v233
    %v316 = vpop.f32.mrf.mxu0
    %v317 = vadd.f32 0.0, %v316
    %v318 = vpop.f32.mrf.mxu0
    %319 = vdwg.mxu0
    %v320 = vld [vmem:[%s5] sm:$0x1]
    %v321 = vld [vmem:[%s6] sm:$0x1]
    %v322 = vrot.slane %v317, 4
    %v323 = vadd.f32 %v317, %v322
    %v324 = vrot.slane %v323, 2
    %v325 = vadd.f32 %v323, %v324
    %v326 = vrot.slane %v325, 1
    %v327 = vadd.f32 %v325, %v326
    %v328 = vmul.f32 %v327, %v203
    %v329 = vsub.f32 %v317, %v328
    %v330 = vmul.f32 %v329, %v329
    %v331 = vrot.slane %v330, 4
    %v332 = vadd.f32 %v330, %v331
    %v333 = vrot.slane %v332, 2
    %v334 = vadd.f32 %v332, %v333
    %v335 = vrot.slane %v334, 1
    %v336 = vadd.f32 %v334, %v335
    %v337 = vmul.f32 %v336, %v203
    %v338 = vadd.f32 %v337, 1e-05
    %v339 = vrsqrt.pop %v338
    %v340 = vmul.f32 %v320, %v339
    %v342 = vlaneseq
    %v343 = vshrl.u32 %v342, 7
    %v344 = vsub.s32 0, %v343
    %v345 = vrot.slane %v340, %v344
    %v347 = vmul.f32 %v329, %v345
    %v349 = vlaneseq
    %v350 = vshrl.u32 %v349, 7
    %v351 = vsub.s32 0, %v350
    %v352 = vrot.slane %v321, %v351
    %v354 = vadd.f32 %v347, %v352
    %v355 = vtanh.pop %v354
    %v356 = vld [vmem:[#allocation8] sm:$0xff]
    %v357 = vld [vmem:[#allocation8 + $0x8] sm:$0xff]
    %v358 = vld [vmem:[#allocation8 + $0x10] sm:$0xff]
    %v359 = vld [vmem:[#allocation8 + $0x18] sm:$0xff]
    %v360 = vld [vmem:[#allocation8 + $0x20] sm:$0xff]
    %v361 = vld [vmem:[#allocation8 + $0x28] sm:$0xff]
    %v362 = vld [vmem:[#allocation8 + $0x30] sm:$0xff]
    %v363 = vld [vmem:[#allocation8 + $0x38] sm:$0xff]
    %v364 = vld [vmem:[#allocation8 + $0x40] sm:$0xff]
    %v365 = vld [vmem:[#allocation8 + $0x48] sm:$0xff]
    %v366 = vld [vmem:[#allocation8 + $0x50] sm:$0xff]
    %v367 = vld [vmem:[#allocation8 + $0x58] sm:$0xff]
    %v368 = vld [vmem:[#allocation8 + $0x60] sm:$0xff]
    %v369 = vld [vmem:[#allocation8 + $0x68] sm:$0xff]
    %v370 = vld [vmem:[#allocation8 + $0x70] sm:$0xff]
    %v371 = vld [vmem:[#allocation8 + $0x78] sm:$0xff]
    %372 = vmatprep.subr.mxu0 0.0
    %373 = vmatpush1.msra.mxu0 %v371
    %374 = vmatprep.subr.mxu0 0.0
    %375 = vmatpush1.msra.mxu0 %v370
    %376 = vmatprep.subr.mxu0 0.0
    %377 = vmatpush1.msra.mxu0 %v369
    %378 = vmatprep.subr.mxu0 0.0
    %379 = vmatpush1.msra.mxu0 %v368
    %380 = vmatprep.subr.mxu0 0.0
    %381 = vmatpush1.msra.mxu0 %v367
    %382 = vmatprep.subr.mxu0 0.0
    %383 = vmatpush1.msra.mxu0 %v366
    %384 = vmatprep.subr.mxu0 0.0
    %385 = vmatpush1.msra.mxu0 %v365
    %386 = vmatprep.subr.mxu0 0.0
    %387 = vmatpush1.msra.mxu0 %v364
    %388 = vmatprep.subr.mxu0 0.0
    %389 = vmatpush1.msra.mxu0 %v363
    %390 = vmatprep.subr.mxu0 0.0
    %391 = vmatpush1.msra.mxu0 %v362
    %392 = vmatprep.subr.mxu0 0.0
    %393 = vmatpush1.msra.mxu0 %v361
    %394 = vmatprep.subr.mxu0 0.0
    %395 = vmatpush1.msra.mxu0 %v360
    %396 = vmatprep.subr.mxu0 0.0
    %397 = vmatpush1.msra.mxu0 %v359
    %398 = vmatprep.subr.mxu0 0.0
    %399 = vmatpush1.msra.mxu0 %v358
    %400 = vmatprep.subr.mxu0 0.0
    %401 = vmatpush1.msra.mxu0 %v357
    %402 = vmatprep.subr.mxu0 0.0
    %403 = vmatpush1.msra.mxu0 %v356
    %404 = vmatprep.subr.mxu0 0.0
    %405 = vmatpush2.msra.mxu0 0.0
    %406 = vmatprep.subr.mxu0 0.0
    %407 = vmatpush2.msra.mxu0 0.0
    %408 = vmatprep.subr.mxu0 0.0
    %409 = vmatpush2.msra.mxu0 0.0
    %410 = vmatprep.subr.mxu0 0.0
    %411 = vmatpush2.msra.mxu0 0.0
    %412 = vmatprep.subr.mxu0 0.0
    %413 = vmatpush2.msra.mxu0 0.0
    %414 = vmatprep.subr.mxu0 0.0
    %415 = vmatpush2.msra.mxu0 0.0
    %416 = vmatprep.subr.mxu0 0.0
    %417 = vmatpush2.msra.mxu0 0.0
    %418 = vmatprep.subr.mxu0 0.0
    %419 = vmatpush2.msra.mxu0 0.0
    %420 = vmatprep.subr.mxu0 0.0
    %421 = vmatpush2.msra.mxu0 0.0
    %422 = vmatprep.subr.mxu0 0.0
    %423 = vmatpush2.msra.mxu0 0.0
    %424 = vmatprep.subr.mxu0 0.0
    %425 = vmatpush2.msra.mxu0 0.0
    %426 = vmatprep.subr.mxu0 0.0
    %427 = vmatpush2.msra.mxu0 0.0
    %428 = vmatprep.subr.mxu0 0.0
    %429 = vmatpush2.msra.mxu0 0.0
    %430 = vmatprep.subr.mxu0 0.0
    %431 = vmatpush2.msra.mxu0 0.0
    %432 = vmatprep.subr.mxu0 0.0
    %433 = vmatpush2.msra.mxu0 0.0
    %434 = vmatprep.subr.mxu0 0.0
    %435 = vmatpush2.msra.mxu0 0.0
    %436 = vmatprep.mubr.f32.mxu0 0.0
    %437 = vmatmul.mubr.f32.gmra.mxu0 %v355
    %v438 = vpop.f32.mrf.mxu0
    %v439 = vadd.f32 0.0, %v438
    %v440 = vpop.f32.mrf.mxu0
    %441 = vdwg.mxu0
    %v442 = vld [vmem:[%s8] sm:$0x1]
    %v443 = vld [vmem:[%s9] sm:$0x1]
    %v444 = vrot.slane %v439, 4
    %v445 = vadd.f32 %v439, %v444
    %v446 = vrot.slane %v445, 2
    %v447 = vadd.f32 %v445, %v446
    %v448 = vrot.slane %v447, 1
    %v449 = vadd.f32 %v447, %v448
    %v450 = vmul.f32 %v449, %v203
    %v451 = vsub.f32 %v439, %v450
    %v452 = vmul.f32 %v451, %v451
    %v453 = vrot.slane %v452, 4
    %v454 = vadd.f32 %v452, %v453
    %v455 = vrot.slane %v454, 2
    %v456 = vadd.f32 %v454, %v455
    %v457 = vrot.slane %v456, 1
    %v458 = vadd.f32 %v456, %v457
    %v459 = vmul.f32 %v458, %v203
    %v460 = vadd.f32 %v459, 1e-05
    %v461 = vrsqrt.pop %v460
    %v462 = vmul.f32 %v442, %v461
    %v464 = vlaneseq
    %v465 = vshrl.u32 %v464, 7
    %v466 = vsub.s32 0, %v465
    %v467 = vrot.slane %v462, %v466
    %v469 = vmul.f32 %v451, %v467
    %v471 = vlaneseq
    %v472 = vshrl.u32 %v471, 7
    %v473 = vsub.s32 0, %v472
    %v474 = vrot.slane %v443, %v473
    %v476 = vadd.f32 %v469, %v474
    %vm477 = vcmp.gt.f32.partialorder %v476, 0.0
    %v478 = vmul.f32 %v476, 0.01
    %v479 = vsel %vm477, %v476, %v478
    %v480 = vld [vmem:[#allocation10] sm:$0xff]
    %v481 = vld [vmem:[#allocation10 + $0x8] sm:$0xff]
    %v482 = vld [vmem:[#allocation10 + $0x10] sm:$0xff]
    %v483 = vld [vmem:[#allocation10 + $0x18] sm:$0xff]
    %v484 = vld [vmem:[#allocation10 + $0x20] sm:$0xff]
    %v485 = vld [vmem:[#allocation10 + $0x28] sm:$0xff]
    %v486 = vld [vmem:[#allocation10 + $0x30] sm:$0xff]
    %v487 = vld [vmem:[#allocation10 + $0x38] sm:$0xff]
    %v488 = vld [vmem:[#allocation10 + $0x40] sm:$0xff]
    %v489 = vld [vmem:[#allocation10 + $0x48] sm:$0xff]
    %v490 = vld [vmem:[#allocation10 + $0x50] sm:$0xff]
    %v491 = vld [vmem:[#allocation10 + $0x58] sm:$0xff]
    %v492 = vld [vmem:[#allocation10 + $0x60] sm:$0xff]
    %v493 = vld [vmem:[#allocation10 + $0x68] sm:$0xff]
    %v494 = vld [vmem:[#allocation10 + $0x70] sm:$0xff]
    %v495 = vld [vmem:[#allocation10 + $0x78] sm:$0xff]
    %v496 = vld [vmem:[%s11] sm:$0x1]
    %v498 = vlaneseq
    %v499 = vshrl.u32 %v498, 7
    %v500 = vsub.s32 0, %v499
    %v501 = vrot.slane %v496, %v500
    %503 = vmatprep.subr.mxu0 0.0
    %504 = vmatpush1.msra.mxu0 %v495
    %505 = vmatprep.subr.mxu0 0.0
    %506 = vmatpush1.msra.mxu0 %v494
    %507 = vmatprep.subr.mxu0 0.0
    %508 = vmatpush1.msra.mxu0 %v493
    %509 = vmatprep.subr.mxu0 0.0
    %510 = vmatpush1.msra.mxu0 %v492
    %511 = vmatprep.subr.mxu0 0.0
    %512 = vmatpush1.msra.mxu0 %v491
    %513 = vmatprep.subr.mxu0 0.0
    %514 = vmatpush1.msra.mxu0 %v490
    %515 = vmatprep.subr.mxu0 0.0
    %516 = vmatpush1.msra.mxu0 %v489
    %517 = vmatprep.subr.mxu0 0.0
    %518 = vmatpush1.msra.mxu0 %v488
    %519 = vmatprep.subr.mxu0 0.0
    %520 = vmatpush1.msra.mxu0 %v487
    %521 = vmatprep.subr.mxu0 0.0
    %522 = vmatpush1.msra.mxu0 %v486
    %523 = vmatprep.subr.mxu0 0.0
    %524 = vmatpush1.msra.mxu0 %v485
    %525 = vmatprep.subr.mxu0 0.0
    %526 = vmatpush1.msra.mxu0 %v484
    %527 = vmatprep.subr.mxu0 0.0
    %528 = vmatpush1.msra.mxu0 %v483
    %529 = vmatprep.subr.mxu0 0.0
    %530 = vmatpush1.msra.mxu0 %v482
    %531 = vmatprep.subr.mxu0 0.0
    %532 = vmatpush1.msra.mxu0 %v481
    %533 = vmatprep.subr.mxu0 0.0
    %534 = vmatpush1.msra.mxu0 %v480
    %535 = vmatprep.subr.mxu0 0.0
    %536 = vmatpush2.msra.mxu0 0.0
    %537 = vmatprep.subr.mxu0 0.0
    %538 = vmatpush2.msra.mxu0 0.0
    %539 = vmatprep.subr.mxu0 0.0
    %540 = vmatpush2.msra.mxu0 0.0
    %541 = vmatprep.subr.mxu0 0.0
    %542 = vmatpush2.msra.mxu0 0.0
    %543 = vmatprep.subr.mxu0 0.0
    %544 = vmatpush2.msra.mxu0 0.0
    %545 = vmatprep.subr.mxu0 0.0
    %546 = vmatpush2.msra.mxu0 0.0
    %547 = vmatprep.subr.mxu0 0.0
    %548 = vmatpush2.msra.mxu0 0.0
    %549 = vmatprep.subr.mxu0 0.0
    %550 = vmatpush2.msra.mxu0 0.0
    %551 = vmatprep.subr.mxu0 0.0
    %552 = vmatpush2.msra.mxu0 0.0
    %553 = vmatprep.subr.mxu0 0.0
    %554 = vmatpush2.msra.mxu0 0.0
    %555 = vmatprep.subr.mxu0 0.0
    %556 = vmatpush2.msra.mxu0 0.0
    %557 = vmatprep.subr.mxu0 0.0
    %558 = vmatpush2.msra.mxu0 0.0
    %559 = vmatprep.subr.mxu0 0.0
    %560 = vmatpush2.msra.mxu0 0.0
    %561 = vmatprep.subr.mxu0 0.0
    %562 = vmatpush2.msra.mxu0 0.0
    %563 = vmatprep.subr.mxu0 0.0
    %564 = vmatpush2.msra.mxu0 0.0
    %565 = vmatprep.subr.mxu0 0.0
    %566 = vmatpush2.msra.mxu0 0.0
    %567 = vmatprep.mubr.f32.mxu0 0.0
    %568 = vmatmul.mubr.f32.gmra.mxu0 %v479
    %v569 = vpop.f32.mrf.mxu0
    %v570 = vadd.f32 %v501, %v569
    %v571 = vpop.f32.mrf.mxu0
    %572 = vdwg.mxu0
    %v573 = vand.u32 2147483647, %v570
    %v574 = vsub.f32 0.0, %v573
    %v575 = vmul.f32 %v574, 1.442695
    %v576 = vpow.pop %v575
    %v577 = vadd.f32 %v576, 1.0
    %v578 = vrcp.pop %v577
    %v579 = vmul.f32 1.0, %v578
    %vm580 = vcmp.ge.f32.partialorder %v570, 0.0
    %v581 = vsub.f32 1.0, %v579
    %v582 = vsel %vm580, %v579, %v581
    %583 = vst [vmem:[#allocation11] sm:$0xff] %v582
    // Predicated region
    $region70: #{tpu_custom_call.1} parent=1 // pred_check
      _
    $region71: #{tpu_custom_call.1} parent=1 // pred_check_branch
      %585 = sbr.rel (0) target = $region73
    $region72: #{tpu_custom_call.1} parent=1 // pred_region
      %s587 = ssub.s32 128, 128
      %588 = vsyncadd [#allocation4], %s587
      %s590 = sshll.u32 [#allocation11], 4
      %s591 = int_to_ptr.vmem [resolvable:$true] %s590
      %593 = dma.vmem_to_hbm [thread:$0]  %s591, 128, %s12, [#allocation4]
    $region73: #{tpu_custom_call.1} parent=1 // pred_fallthru
      _
    // Predicated region
    $region74: #{tpu_custom_call.1} parent=1 // pred_check
      _
    $region75: #{tpu_custom_call.1} parent=1 // pred_check_branch
      %595 = sbr.rel (0) target = $region77
    $region76: #{tpu_custom_call.1} parent=1 // pred_region
      %596 = dma.done [#allocation4], 128
    $region77: #{tpu_custom_call.1} parent=1 // pred_fallthru
      _
    %597 = vsyncpa [#allocation3], 1
    %598 = vsyncpa [#allocation6], 1
    %599 = vsyncpa [#allocation9], 1
    %600 = vsyncpa [#allocation4], 1

</llo_original>
